<compile_context>
chip_gen: v7x
topology: tpu7x:2x2x1
jax: 0.10.0
libtpu: 0.0.40
codegen_flags: <defaults>
</compile_context>

<pallas_src>
import jax
import jax.numpy as jnp
from jax.experimental import pallas as pl
from jax.experimental.pallas import tpu as pltpu

_LEAKY_SLOPE = 0.01                 # PyTorch nn.LeakyReLU default
_VMEM_BUDGET = 24 * 1024 * 1024     # conservative: leaves headroom on v7x (64 MiB VMEM)
_TARGET_ROWS = 512                  # aim for >= 512 MXU rows per grid step


# --------------------------------------------------------------------------- #
# Kernel 1: context hyper-nets (tiny) -- one single-step kernel for the whole
# batch, hoisted out of the main grid.
# --------------------------------------------------------------------------- #
def _hyper_kernel(*refs):
    """gate = sigmoid(MLP_gate(ctx)); hyper_bias = MLP_bias(ctx).

    refs = (ctx, gw0..gw3, gb0..gb3, bw0..bw3, gate_out, bias_out).
    Weights are pre-transposed to (in, out); gate biases are (1, dim_out).
    """
    ctx_ref = refs[0]
    gws, gbs, bws = refs[1:5], refs[5:9], refs[9:13]
    gate_ref, bias_ref = refs[13], refs[14]

    c = ctx_ref[...].astype(jnp.float32)

    g = c
    for i in range(4):
        g = jnp.dot(g, gws[i][...], preferred_element_type=jnp.float32) + gbs[i][...]
        if i < 3:
            g = jnp.where(g > 0, g, _LEAKY_SLOPE * g)
    gate_ref[...] = 1.0 / (1.0 + jnp.exp(-g))          # sigmoid (exp on the EUP)

    h = c
    for i in range(4):
        h = jnp.dot(h, bws[i][...], preferred_element_type=jnp.float32)
        if i < 3:
            h = jnp.where(h > 0, h, _LEAKY_SLOPE * h)
    bias_ref[...] = h


def _hyper_gate_and_bias(context, params, dim_out):
    b = context.shape[0]
    ctx32 = context.astype(jnp.float32)
    gate_w_t = [jnp.asarray(w.T, jnp.float32) for w in params["gate_w"]]
    gate_b2 = [jnp.asarray(v, jnp.float32)[None, :] for v in params["gate_b"]]
    bias_w_t = [jnp.asarray(w.T, jnp.float32) for w in params["bias_w"]]
    return pl.pallas_call(
        _hyper_kernel,
        out_shape=(jax.ShapeDtypeStruct((b, dim_out), jnp.float32),
                   jax.ShapeDtypeStruct((b, dim_out), jnp.float32)),
    )(ctx32, *gate_w_t, *gate_b2, *bias_w_t)


# --------------------------------------------------------------------------- #
# Kernel 2: fused (x @ W + b) * gate + bias, batch-tiled grid.
# --------------------------------------------------------------------------- #
def _gated_linear_seq_kernel(x_ref, gate_ref, bias_ref, w_ref, b_ref, o_ref):
    """3-D inputs: one (TB, S) batch tile per grid step."""
    tb, s, d_in = x_ref.shape
    d_out = o_ref.shape[-1]
    # Collapse (TB, S) -> TB*S so every grid step feeds the MXU ONE big matmul.
    # The wrapper guarantees S is sublane-aligned for the compute dtype (or
    # forces TB == 1, where this is a unit-dim squeeze), so these reshapes are
    # layout-free.
    x2 = x_ref[...].reshape(tb * s, d_in)
    h = jnp.dot(x2, w_ref[...], preferred_element_type=jnp.float32) + b_ref[...]
    h = h.reshape(tb, s, d_out)
    # gate/bias are (TB, 1, dim_out): broadcast over the sequence axis, f32 VPU.
    o_ref[...] = (h * gate_ref[...] + bias_ref[...]).astype(o_ref.dtype)


def _gated_linear_rows_kernel(x_ref, gate_ref, bias_ref, w_ref, b_ref, o_ref):
    """2-D inputs: a tile of rows per grid step, gate/bias are per-row."""
    h = jnp.dot(x_ref[...], w_ref[...], preferred_element_type=jnp.float32) + b_ref[...]
    o_ref[...] = (h * gate_ref[...] + bias_ref[...]).astype(o_ref.dtype)


# --------------------------------------------------------------------------- #
# Tile selection
# --------------------------------------------------------------------------- #
def _choose_batch_tile(b, s, dim_in, dim_out, itemsize):
    """Batch tile TB for 3-D inputs: aim for ~_TARGET_ROWS MXU rows per step."""
    sublane = {4: 8, 2: 16, 1: 32}.get(itemsize, 8)
    if s % sublane != 0:
        # The in-kernel (TB, S, d) -> (TB*S, d) collapse is only layout-free when
        # S is sublane-aligned; TB == 1 degenerates to a safe unit-dim squeeze.
        return 1

    def vmem_bytes(t):
        return (2 * t * s * (dim_in + dim_out) * itemsize   # x + out, double-buffered
                + 4 * t * dim_out * 4                       # gate + bias (f32), double-buffered
                + (dim_in + 1) * dim_out * itemsize)        # single-buffered weight + bias

    tb = max(1, min(b, pl.cdiv(_TARGET_ROWS, s)))
    while tb > 1 and vmem_bytes(tb) > _VMEM_BUDGET:
        tb -= 1
    # Give megacore (v7x: 2 TCs) at least two parallel grid steps when worthwhile.
    if tb == b and b >= 2 and b * s >= 2 * _TARGET_ROWS:
        tb = pl.cdiv(b, 2)
    while b % tb:                                           # keep every block full
        tb -= 1
    return tb


def _choose_row_tile(n_rows, dim_in, dim_out, itemsize):
    """Row tile for 2-D inputs (second-minor block dim: multiple of 8 or full)."""
    def vmem_bytes(t):
        return (2 * t * (dim_in + dim_out) * itemsize
                + 4 * t * dim_out * 4
                + (dim_in + 1) * dim_out * itemsize)

    tile = min(n_rows, _TARGET_ROWS)
    while tile > 8 and vmem_bytes(tile) > _VMEM_BUDGET:
        tile -= 8
    if tile < n_rows:
        tile = max(8, (tile // 8) * 8)
    return min(tile, n_rows)


# --------------------------------------------------------------------------- #
# Wrapper
# --------------------------------------------------------------------------- #
def concat_squash_linear(context, x, params, *, compute_dtype=None):
    """ConcatSquashLinear forward, fused on TPU with Pallas.

    context: (B, 1 + dim_c)
    x:       (B, dim_in) or (B, S, dim_in)
    params (PyTorch nn.Linear layout):
      layer_w (dim_out, dim_in), layer_b (dim_out,)
      gate_w  [(dim_out, 1+dim_c)] + [(dim_out, dim_out)]*3, gate_b [(dim_out,)]*4
      bias_w  [(dim_out, 1+dim_c)] + [(dim_out, dim_out)]*3   (bias-free MLP)
    compute_dtype: dtype of the main matmul's MXU operands (x, layer_w); defaults
      to x.dtype. Pass jnp.bfloat16 to halve HBM traffic / double MXU rate;
      accumulation and the gate/bias epilogue always stay float32.
    """
    if compute_dtype is None:
        compute_dtype = x.dtype
    compute_dtype = jnp.dtype(compute_dtype)
    out_dtype = x.dtype

    dim_out, dim_in = params["layer_w"].shape
    b = x.shape[0]

    # Tiny per-batch hyper-nets, computed once (not once per grid step).
    gate, hyper_bias = _hyper_gate_and_bias(context, params, dim_out)  # (B, dim_out) f32

    w_t = jnp.asarray(params["layer_w"].T, compute_dtype)              # (dim_in, dim_out)
    b2 = jnp.asarray(params["layer_b"], jnp.float32)[None, :]          # (1, dim_out)
    x_c = x.astype(compute_dtype)
    itemsize = compute_dtype.itemsize

    compiler_params = pltpu.CompilerParams(
        dimension_semantics=("parallel",),        # shard batch tiles across TCs (v7x)
        vmem_limit_bytes=48 * 1024 * 1024,        # explicit; fits v7x's 64 MiB VMEM
    )
    # Grid-invariant operands (layer weight + bias): single-buffer to reclaim VMEM.
    invariant = dict(pipeline_mode=pl.Buffered(buffer_count=1))

    if x.ndim == 3:
        _, s, _ = x.shape
        tb = _choose_batch_tile(b, s, dim_in, dim_out, itemsize)
        return pl.pallas_call(
            _gated_linear_seq_kernel,
            out_shape=jax.ShapeDtypeStruct((b, s, dim_out), out_dtype),
            grid_spec=pltpu.PrefetchScalarGridSpec(
                num_scalar_prefetch=0,
                grid=(b // tb,),
                in_specs=[
                    pl.BlockSpec((tb, s, dim_in), lambda i: (i, 0, 0)),
                    pl.BlockSpec((tb, 1, dim_out), lambda i: (i, 0, 0)),
                    pl.BlockSpec((tb, 1, dim_out), lambda i: (i, 0, 0)),
                    pl.BlockSpec((dim_in, dim_out), lambda i: (0, 0), **invariant),
                    pl.BlockSpec((1, dim_out), lambda i: (0, 0), **invariant),
                ],
                out_specs=pl.BlockSpec((tb, s, dim_out), lambda i: (i, 0, 0)),
            ),
            compiler_params=compiler_params,
        )(x_c, gate[:, None, :], hyper_bias[:, None, :], w_t, b2)

    # 2-D path (x.dim() == 2 in PyTorch): gate/bias are already per-row.
    tr = _choose_row_tile(b, dim_in, dim_out, itemsize)
    return pl.pallas_call(
        _gated_linear_rows_kernel,
        out_shape=jax.ShapeDtypeStruct((b, dim_out), out_dtype),
        grid_spec=pltpu.PrefetchScalarGridSpec(
            num_scalar_prefetch=0,
            grid=(pl.cdiv(b, tr),),
            in_specs=[
                pl.BlockSpec((tr, dim_in), lambda i: (i, 0)),
                pl.BlockSpec((tr, dim_out), lambda i: (i, 0)),
                pl.BlockSpec((tr, dim_out), lambda i: (i, 0)),
                pl.BlockSpec((dim_in, dim_out), lambda i: (0, 0), **invariant),
                pl.BlockSpec((1, dim_out), lambda i: (0, 0), **invariant),
            ],
            out_specs=pl.BlockSpec((tr, dim_out), lambda i: (i, 0)),
        ),
        compiler_params=compiler_params,
    )(x_c, gate, hyper_bias, w_t, b2)


# --------------------------------------------------------------------------- #
# Pure-JAX reference (mirrors the PyTorch forward) and parameter construction
# --------------------------------------------------------------------------- #
def _reference(context, x, params):
    g = context
    for i in range(4):
        g = g @ params["gate_w"][i].T + params["gate_b"][i]
        if i < 3:
            g = jax.nn.leaky_relu(g, _LEAKY_SLOPE)
    gate = jax.nn.sigmoid(g)

    hb = context
    for i in range(4):
        hb = hb @ params["bias_w"][i].T
        if i < 3:
            hb = jax.nn.leaky_relu(hb, _LEAKY_SLOPE)

    h = x @ params["layer_w"].T + params["layer_b"]
    if x.ndim == 3:
        gate = gate[:, None, :]
        hb = hb[:, None, :]
    return h * gate + hb


def _make_params(key, dim_in, dim_out, dim_c):
    dim_c1 = 1 + dim_c
    ks = list(jax.random.split(key, 14))
    in_dims = [dim_c1, dim_out, dim_out, dim_out]
    return {
        "layer_w": jax.random.normal(ks[0], (dim_out, dim_in), jnp.float32) * 0.1,
        "layer_b": jax.random.normal(ks[1], (dim_out,), jnp.float32) * 0.1,
        "gate_w": [jax.random.normal(ks[2 + i], (dim_out, in_dims[i]), jnp.float32) * 0.1
                   for i in range(4)],
        "gate_b": [jax.random.normal(ks[6 + i], (dim_out,), jnp.float32) * 0.1
                   for i in range(4)],
        "bias_w": [jax.random.normal(ks[10 + i], (dim_out, in_dims[i]), jnp.float32) * 0.1
                   for i in range(4)],
    }


if __name__ == "__main__":
    # Small shapes consistent with the module: batch=2, seq=16, hidden=32, dim_c=3.
    B, S = 2, 16
    dim_in, dim_out, dim_c = 32, 32, 3

    root = jax.random.PRNGKey(0)
    k_ctx, k_x, k_x2, k_params, k_big = jax.random.split(root, 5)

    context = jax.random.normal(k_ctx, (B, 1 + dim_c), dtype=jnp.float32)
    x = jax.random.normal(k_x, (B, S, dim_in), dtype=jnp.float32)
    params = _make_params(k_params, dim_in, dim_out, dim_c)

    # 3-D path, f32 compute.
    out = jax.block_until_ready(concat_squash_linear(context, x, params))
    ref = _reference(context, x, params)
    assert out.shape == (B, S, dim_out)
    assert jnp.allclose(out, ref, atol=1e-4, rtol=1e-4), "3-D f32 path mismatch"

    # 2-D path (x.dim() == 2 in PyTorch).
    x2 = jax.random.normal(k_x2, (B, dim_in), dtype=jnp.float32)
    out2 = jax.block_until_ready(concat_squash_linear(context, x2, params))
    ref2 = _reference(context, x2, params)
    assert out2.shape == (B, dim_out)
    assert jnp.allclose(out2, ref2, atol=1e-4, rtol=1e-4), "2-D path mismatch"

    # bf16 MXU operands (f32 accumulation / f32 epilogue), looser tolerance.
    out_bf16 = jax.block_until_ready(
        concat_squash_linear(context, x, params, compute_dtype=jnp.bfloat16))
    assert out_bf16.shape == (B, S, dim_out)
    assert jnp.allclose(out_bf16, ref, atol=5e-2, rtol=5e-2), "bf16 path mismatch"

    # A slightly larger, multi-step grid (TB < B) exercising the batch-tiled
    # pipeline and single-buffered weight reuse across steps.
    Bb, Sb, Db = 16, 64, 128
    kb_ctx, kb_x, kb_p = jax.random.split(k_big, 3)
    ctx_b = jax.random.normal(kb_ctx, (Bb, 1 + dim_c), dtype=jnp.float32)
    x_b = jax.random.normal(kb_x, (Bb, Sb, Db), dtype=jnp.float32)
    params_b = _make_params(kb_p, Db, Db, dim_c)
    out_b = jax.block_until_ready(concat_squash_linear(ctx_b, x_b, params_b))
    ref_b = _reference(ctx_b, x_b, params_b)
    assert out_b.shape == (Bb, Sb, Db)
    assert jnp.allclose(out_b, ref_b, atol=1e-2, rtol=1e-2), "multi-step grid mismatch"

    print("KERNEL_OK")
</pallas_src>

<mosaic_0001>
module attributes {stable_mosaic.version = 11 : i64} {
  func.func @_hyper_kernel(%arg0: memref<2x4xf32, #tpu.memory_space<vmem>>, %arg1: memref<4x32xf32, #tpu.memory_space<vmem>>, %arg2: memref<32x32xf32, #tpu.memory_space<vmem>>, %arg3: memref<32x32xf32, #tpu.memory_space<vmem>>, %arg4: memref<32x32xf32, #tpu.memory_space<vmem>>, %arg5: memref<1x32xf32, #tpu.memory_space<vmem>>, %arg6: memref<1x32xf32, #tpu.memory_space<vmem>>, %arg7: memref<1x32xf32, #tpu.memory_space<vmem>>, %arg8: memref<1x32xf32, #tpu.memory_space<vmem>>, %arg9: memref<4x32xf32, #tpu.memory_space<vmem>>, %arg10: memref<32x32xf32, #tpu.memory_space<vmem>>, %arg11: memref<32x32xf32, #tpu.memory_space<vmem>>, %arg12: memref<32x32xf32, #tpu.memory_space<vmem>>, %arg13: memref<2x32xf32, #tpu.memory_space<vmem>>, %arg14: memref<2x32xf32, #tpu.memory_space<vmem>>) attributes {dimension_semantics = [], scalar_prefetch = 0 : i64, scratch_operands = 0 : i64, tpu.core_type = #tpu.core_type<tc>} {
    %c0 = arith.constant 0 : index
    %c0_0 = arith.constant 0 : index
    %0 = vector.load %arg0[%c0, %c0_0] : memref<2x4xf32, #tpu.memory_space<vmem>>, vector<2x4xf32>
    %c0_1 = arith.constant 0 : index
    %c0_2 = arith.constant 0 : index
    %1 = vector.load %arg1[%c0_1, %c0_2] : memref<4x32xf32, #tpu.memory_space<vmem>>, vector<4x32xf32>
    %cst = arith.constant dense<0.000000e+00> : vector<2x32xf32>
    %2 = tpu.matmul %0, %1, %cst {dimension_numbers = #tpu.dot_dimension_numbers<[1], [0], [0], [1], [0, 0, 1, 1], [], []>} : vector<2x4xf32>, vector<4x32xf32>, vector<2x32xf32> -> vector<2x32xf32>
    %c0_3 = arith.constant 0 : index
    %c0_4 = arith.constant 0 : index
    %3 = vector.load %arg5[%c0_3, %c0_4] : memref<1x32xf32, #tpu.memory_space<vmem>>, vector<1x32xf32>
    %4 = vector.broadcast %3 : vector<1x32xf32> to vector<2x32xf32>
    %5 = arith.addf %2, %4 : vector<2x32xf32>
    %cst_5 = arith.constant 0.000000e+00 : f32
    %6 = vector.broadcast %cst_5 : f32 to vector<2x32xf32>
    %7 = arith.cmpf ogt, %5, %6 : vector<2x32xf32>
    %cst_6 = arith.constant 0.00999999977 : f32
    %8 = vector.broadcast %cst_6 : f32 to vector<2x32xf32>
    %9 = arith.mulf %8, %5 : vector<2x32xf32>
    %10 = arith.select %7, %5, %9 : vector<2x32xi1>, vector<2x32xf32>
    %c0_7 = arith.constant 0 : index
    %c0_8 = arith.constant 0 : index
    %11 = vector.load %arg2[%c0_7, %c0_8] : memref<32x32xf32, #tpu.memory_space<vmem>>, vector<32x32xf32>
    %cst_9 = arith.constant dense<0.000000e+00> : vector<2x32xf32>
    %12 = tpu.matmul %10, %11, %cst_9 {dimension_numbers = #tpu.dot_dimension_numbers<[1], [0], [0], [1], [0, 0, 1, 1], [], []>} : vector<2x32xf32>, vector<32x32xf32>, vector<2x32xf32> -> vector<2x32xf32>
    %c0_10 = arith.constant 0 : index
    %c0_11 = arith.constant 0 : index
    %13 = vector.load %arg6[%c0_10, %c0_11] : memref<1x32xf32, #tpu.memory_space<vmem>>, vector<1x32xf32>
    %14 = vector.broadcast %13 : vector<1x32xf32> to vector<2x32xf32>
    %15 = arith.addf %12, %14 : vector<2x32xf32>
    %cst_12 = arith.constant 0.000000e+00 : f32
    %16 = vector.broadcast %cst_12 : f32 to vector<2x32xf32>
    %17 = arith.cmpf ogt, %15, %16 : vector<2x32xf32>
    %cst_13 = arith.constant 0.00999999977 : f32
    %18 = vector.broadcast %cst_13 : f32 to vector<2x32xf32>
    %19 = arith.mulf %18, %15 : vector<2x32xf32>
    %20 = arith.select %17, %15, %19 : vector<2x32xi1>, vector<2x32xf32>
    %c0_14 = arith.constant 0 : index
    %c0_15 = arith.constant 0 : index
    %21 = vector.load %arg3[%c0_14, %c0_15] : memref<32x32xf32, #tpu.memory_space<vmem>>, vector<32x32xf32>
    %cst_16 = arith.constant dense<0.000000e+00> : vector<2x32xf32>
    %22 = tpu.matmul %20, %21, %cst_16 {dimension_numbers = #tpu.dot_dimension_numbers<[1], [0], [0], [1], [0, 0, 1, 1], [], []>} : vector<2x32xf32>, vector<32x32xf32>, vector<2x32xf32> -> vector<2x32xf32>
    %c0_17 = arith.constant 0 : index
    %c0_18 = arith.constant 0 : index
    %23 = vector.load %arg7[%c0_17, %c0_18] : memref<1x32xf32, #tpu.memory_space<vmem>>, vector<1x32xf32>
    %24 = vector.broadcast %23 : vector<1x32xf32> to vector<2x32xf32>
    %25 = arith.addf %22, %24 : vector<2x32xf32>
    %cst_19 = arith.constant 0.000000e+00 : f32
    %26 = vector.broadcast %cst_19 : f32 to vector<2x32xf32>
    %27 = arith.cmpf ogt, %25, %26 : vector<2x32xf32>
    %cst_20 = arith.constant 0.00999999977 : f32
    %28 = vector.broadcast %cst_20 : f32 to vector<2x32xf32>
    %29 = arith.mulf %28, %25 : vector<2x32xf32>
    %30 = arith.select %27, %25, %29 : vector<2x32xi1>, vector<2x32xf32>
    %c0_21 = arith.constant 0 : index
    %c0_22 = arith.constant 0 : index
    %31 = vector.load %arg4[%c0_21, %c0_22] : memref<32x32xf32, #tpu.memory_space<vmem>>, vector<32x32xf32>
    %cst_23 = arith.constant dense<0.000000e+00> : vector<2x32xf32>
    %32 = tpu.matmul %30, %31, %cst_23 {dimension_numbers = #tpu.dot_dimension_numbers<[1], [0], [0], [1], [0, 0, 1, 1], [], []>} : vector<2x32xf32>, vector<32x32xf32>, vector<2x32xf32> -> vector<2x32xf32>
    %c0_24 = arith.constant 0 : index
    %c0_25 = arith.constant 0 : index
    %33 = vector.load %arg8[%c0_24, %c0_25] : memref<1x32xf32, #tpu.memory_space<vmem>>, vector<1x32xf32>
    %34 = vector.broadcast %33 : vector<1x32xf32> to vector<2x32xf32>
    %35 = arith.addf %32, %34 : vector<2x32xf32>
    %cst_26 = arith.constant 0.000000e+00 : f32
    %36 = vector.broadcast %cst_26 : f32 to vector<2x32xf32>
    %37 = arith.subf %36, %35 : vector<2x32xf32>
    %38 = math.exp %37 : vector<2x32xf32>
    %cst_27 = arith.constant 1.000000e+00 : f32
    %39 = vector.broadcast %cst_27 : f32 to vector<2x32xf32>
    %40 = arith.addf %39, %38 : vector<2x32xf32>
    %cst_28 = arith.constant 1.000000e+00 : f32
    %41 = vector.broadcast %cst_28 : f32 to vector<2x32xf32>
    %42 = arith.divf %41, %40 : vector<2x32xf32>
    %c0_29 = arith.constant 0 : index
    %c0_30 = arith.constant 0 : index
    %43 = vector.load %arg13[%c0_29, %c0_30] : memref<2x32xf32, #tpu.memory_space<vmem>>, vector<2x32xf32>
    tpu.vector_store %arg13[%c0_29, %c0_30], %42 {strides = array<i32>} : memref<2x32xf32, #tpu.memory_space<vmem>>, vector<2x32xf32>,
    %c0_31 = arith.constant 0 : index
    %c0_32 = arith.constant 0 : index
    %44 = vector.load %arg9[%c0_31, %c0_32] : memref<4x32xf32, #tpu.memory_space<vmem>>, vector<4x32xf32>
    %cst_33 = arith.constant dense<0.000000e+00> : vector<2x32xf32>
    %45 = tpu.matmul %0, %44, %cst_33 {dimension_numbers = #tpu.dot_dimension_numbers<[1], [0], [0], [1], [0, 0, 1, 1], [], []>} : vector<2x4xf32>, vector<4x32xf32>, vector<2x32xf32> -> vector<2x32xf32>
    %cst_34 = arith.constant 0.000000e+00 : f32
    %46 = vector.broadcast %cst_34 : f32 to vector<2x32xf32>
    %47 = arith.cmpf ogt, %45, %46 : vector<2x32xf32>
    %cst_35 = arith.constant 0.00999999977 : f32
    %48 = vector.broadcast %cst_35 : f32 to vector<2x32xf32>
    %49 = arith.mulf %48, %45 : vector<2x32xf32>
    %50 = arith.select %47, %45, %49 : vector<2x32xi1>, vector<2x32xf32>
    %c0_36 = arith.constant 0 : index
    %c0_37 = arith.constant 0 : index
    %51 = vector.load %arg10[%c0_36, %c0_37] : memref<32x32xf32, #tpu.memory_space<vmem>>, vector<32x32xf32>
    %cst_38 = arith.constant dense<0.000000e+00> : vector<2x32xf32>
    %52 = tpu.matmul %50, %51, %cst_38 {dimension_numbers = #tpu.dot_dimension_numbers<[1], [0], [0], [1], [0, 0, 1, 1], [], []>} : vector<2x32xf32>, vector<32x32xf32>, vector<2x32xf32> -> vector<2x32xf32>
    %cst_39 = arith.constant 0.000000e+00 : f32
    %53 = vector.broadcast %cst_39 : f32 to vector<2x32xf32>
    %54 = arith.cmpf ogt, %52, %53 : vector<2x32xf32>
    %cst_40 = arith.constant 0.00999999977 : f32
    %55 = vector.broadcast %cst_40 : f32 to vector<2x32xf32>
    %56 = arith.mulf %55, %52 : vector<2x32xf32>
    %57 = arith.select %54, %52, %56 : vector<2x32xi1>, vector<2x32xf32>
    %c0_41 = arith.constant 0 : index
    %c0_42 = arith.constant 0 : index
    %58 = vector.load %arg11[%c0_41, %c0_42] : memref<32x32xf32, #tpu.memory_space<vmem>>, vector<32x32xf32>
    %cst_43 = arith.constant dense<0.000000e+00> : vector<2x32xf32>
    %59 = tpu.matmul %57, %58, %cst_43 {dimension_numbers = #tpu.dot_dimension_numbers<[1], [0], [0], [1], [0, 0, 1, 1], [], []>} : vector<2x32xf32>, vector<32x32xf32>, vector<2x32xf32> -> vector<2x32xf32>
    %cst_44 = arith.constant 0.000000e+00 : f32
    %60 = vector.broadcast %cst_44 : f32 to vector<2x32xf32>
    %61 = arith.cmpf ogt, %59, %60 : vector<2x32xf32>
    %cst_45 = arith.constant 0.00999999977 : f32
    %62 = vector.broadcast %cst_45 : f32 to vector<2x32xf32>
    %63 = arith.mulf %62, %59 : vector<2x32xf32>
    %64 = arith.select %61, %59, %63 : vector<2x32xi1>, vector<2x32xf32>
    %c0_46 = arith.constant 0 : index
    %c0_47 = arith.constant 0 : index
    %65 = vector.load %arg12[%c0_46, %c0_47] : memref<32x32xf32, #tpu.memory_space<vmem>>, vector<32x32xf32>
    %cst_48 = arith.constant dense<0.000000e+00> : vector<2x32xf32>
    %66 = tpu.matmul %64, %65, %cst_48 {dimension_numbers = #tpu.dot_dimension_numbers<[1], [0], [0], [1], [0, 0, 1, 1], [], []>} : vector<2x32xf32>, vector<32x32xf32>, vector<2x32xf32> -> vector<2x32xf32>
    %c0_49 = arith.constant 0 : index
    %c0_50 = arith.constant 0 : index
    %67 = vector.load %arg14[%c0_49, %c0_50] : memref<2x32xf32, #tpu.memory_space<vmem>>, vector<2x32xf32>
    tpu.vector_store %arg14[%c0_49, %c0_50], %66 {strides = array<i32>} : memref<2x32xf32, #tpu.memory_space<vmem>>, vector<2x32xf32>,
    return
  }
}

</mosaic_0001>

<llo_original>
// kernel: tpu_custom_call.1
$region0: #{tpu_custom_call.1}
  #allocation0 [shape = 'u32[]', space=smem, size = 0x4, offset = 0x4, fixed_abs, tag = 'smem constant byte address 0x4 - core index']
  #allocation1 [shape = 'u32[144,128]{1,0:T(1,128)}', space=vmem, size = 0x12000, scoped, tag = 'internal scratch']
  %s0 = inlined_call_operand.hbm [shape: f32[2,4], index: 0, kind: input, shape index: {}]
  %s1 = inlined_call_operand.hbm [shape: f32[4,32], index: 1, kind: input, shape index: {}]
  %s2 = inlined_call_operand.hbm [shape: f32[32,32], index: 2, kind: input, shape index: {}]
  %s3 = inlined_call_operand.hbm [shape: f32[32,32], index: 3, kind: input, shape index: {}]
  %s4 = inlined_call_operand.hbm [shape: f32[32,32], index: 4, kind: input, shape index: {}]
  %s5 = inlined_call_operand.vmem [shape: f32[1,32], index: 5, kind: input, shape index: {}]
  %s6 = inlined_call_operand.hbm [shape: f32[1,32], index: 6, kind: input, shape index: {}]
  %s7 = inlined_call_operand.hbm [shape: f32[1,32], index: 7, kind: input, shape index: {}]
  %s8 = inlined_call_operand.hbm [shape: f32[1,32], index: 8, kind: input, shape index: {}]
  %s9 = inlined_call_operand.vmem [shape: f32[4,32], index: 9, kind: input, shape index: {}]
  %s10 = inlined_call_operand.vmem [shape: f32[32,32], index: 10, kind: input, shape index: {}]
  %s11 = inlined_call_operand.hbm [shape: f32[32,32], index: 11, kind: input, shape index: {}]
  %s12 = inlined_call_operand.hbm [shape: f32[32,32], index: 12, kind: input, shape index: {}]
  %s13 = inlined_call_operand.hbm [shape: f32[2,32], index: 13, kind: output, shape index: {0}]
  %s14 = inlined_call_operand.hbm [shape: f32[2,32], index: 14, kind: output, shape index: {1}]
  %15 = xla_tuple %s13, %s14
  %s16 = sld [smem:[#allocation0]]
  $region110: #{tpu_custom_call.1} parent=0
    _
  %s18 = ssub.s32 1, %s16
  %s19 = scalar_select 0, %s18, %s16
  $region1: #{tpu_custom_call.1} parent=0
    #allocation2 [shape = 'u8[1024]{0}', space=vmem, size = 0x400, scoped, tag = 'input window, operand 0, single buffered']
    #allocation3 [shape = 's32[1]{0}', space=sflag, size = 0x4, scoped, tag = 'scoped memory for tpu_custom_call.1']
    #allocation4 [shape = 's32[1]{0}', space=sflag, size = 0x4, scoped, tag = 'scoped memory for tpu_custom_call.1']
    #allocation5 [shape = 'u8[2048]{0}', space=vmem, size = 0x800, scoped, tag = 'input window, operand 1, single buffered']
    #allocation6 [shape = 's32[1]{0}', space=sflag, size = 0x4, scoped, tag = 'scoped memory for tpu_custom_call.1']
    #allocation7 [shape = 'u8[16384]{0}', space=vmem, size = 0x4000, scoped, tag = 'input window, operand 2, single buffered']
    #allocation8 [shape = 'u8[16384]{0}', space=vmem, size = 0x4000, scoped, tag = 'input window, operand 3, single buffered']
    #allocation9 [shape = 's32[1]{0}', space=sflag, size = 0x4, scoped, tag = 'scoped memory for tpu_custom_call.1']
    #allocation10 [shape = 'u8[16384]{0}', space=vmem, size = 0x4000, scoped, tag = 'input window, operand 4, single buffered']
    #allocation11 [shape = 'u8[512]{0}', space=vmem, size = 0x400, scoped, tag = 'input window, operand 6, single buffered']
    #allocation12 [shape = 's32[1]{0}', space=sflag, size = 0x4, scoped, tag = 'scoped memory for tpu_custom_call.1']
    #allocation13 [shape = 'u8[512]{0}', space=vmem, size = 0x400, scoped, tag = 'input window, operand 7, single buffered']
    #allocation14 [shape = 'u8[512]{0}', space=vmem, size = 0x400, scoped, tag = 'input window, operand 8, single buffered']
    #allocation15 [shape = 's32[1]{0}', space=sflag, size = 0x4, scoped, tag = 'scoped memory for tpu_custom_call.1']
    #allocation16 [shape = 'u8[16384]{0}', space=vmem, size = 0x4000, scoped, tag = 'input window, operand 11, single buffered']
    #allocation17 [shape = 'u8[16384]{0}', space=vmem, size = 0x4000, scoped, tag = 'input window, operand 12, single buffered']
    #allocation18 [shape = 's32[1]{0}', space=sflag, size = 0x4, scoped, tag = 'scoped memory for tpu_custom_call.1']
    #allocation19 [shape = 'u8[1024]{0}', space=vmem, size = 0x400, scoped, tag = 'output window, operand 0, single buffered']
    #allocation20 [shape = 'u8[1024]{0}', space=vmem, size = 0x400, scoped, tag = 'output window, operand 1, single buffered']
    #allocation21 [shape = 's32[1]{0}', space=sflag, size = 0x4, scoped, tag = 'scoped memory for tpu_custom_call.1']
    %20 = vsyncpa [#allocation3], 0
    %21 = vsyncpa [#allocation6], 0
    %22 = vsyncpa [#allocation9], 0
    %23 = vsyncpa [#allocation12], 0
    %24 = vsyncpa [#allocation15], 0
    %25 = vsyncpa [#allocation18], 0
    %26 = vsyncpa [#allocation4], 0
    %27 = vsyncpa [#allocation21], 0
    // Predicated region
    $region2: #{tpu_custom_call.1} parent=1 // pred_check
      _
    $region3: #{tpu_custom_call.1} parent=1 // pred_check_branch
      %29 = sbr.rel (0) target = $region5
    $region4: #{tpu_custom_call.1} parent=1 // pred_region
      %s31 = ssub.s32 32, 32
      %32 = vsyncadd [#allocation3], %s31
      %s34 = sshll.u32 [#allocation2], 4
      %s35 = int_to_ptr.vmem [resolvable:$true] %s34
      %37 = dma.hbm_to_vmem [thread:$0]  %s0, 32, %s35, [#allocation3]
    $region5: #{tpu_custom_call.1} parent=1 // pred_fallthru
      _
    // Predicated region
    $region6: #{tpu_custom_call.1} parent=1 // pred_check
      _
    $region7: #{tpu_custom_call.1} parent=1 // pred_check_branch
      %39 = sbr.rel (0) target = $region9
    $region8: #{tpu_custom_call.1} parent=1 // pred_region
      %s41 = ssub.s32 64, 64
      %42 = vsyncadd [#allocation6], %s41
      %s44 = sshll.u32 [#allocation5], 4
      %s45 = int_to_ptr.vmem [resolvable:$true] %s44
      %47 = dma.hbm_to_vmem [thread:$0]  %s1, 64, %s45, [#allocation6]
    $region9: #{tpu_custom_call.1} parent=1 // pred_fallthru
      _
    // Predicated region
    $region10: #{tpu_custom_call.1} parent=1 // pred_check
      _
    $region11: #{tpu_custom_call.1} parent=1 // pred_check_branch
      %49 = sbr.rel (0) target = $region13
    $region12: #{tpu_custom_call.1} parent=1 // pred_region
      %s51 = ssub.s32 512, 512
      %52 = vsyncadd [#allocation6], %s51
      %s53 = sshll.u32 [#allocation7], 4
      %s54 = int_to_ptr.vmem [resolvable:$true] %s53
      %59 = dma.hbm_to_vmem [thread:$0]  %s2, 512, %s54, [#allocation6], 128, 128, 8
    $region13: #{tpu_custom_call.1} parent=1 // pred_fallthru
      _
    // Predicated region
    $region14: #{tpu_custom_call.1} parent=1 // pred_check
      _
    $region15: #{tpu_custom_call.1} parent=1 // pred_check_branch
      %61 = sbr.rel (0) target = $region17
    $region16: #{tpu_custom_call.1} parent=1 // pred_region
      %s63 = ssub.s32 512, 512
      %64 = vsyncadd [#allocation9], %s63
      %s65 = sshll.u32 [#allocation8], 4
      %s66 = int_to_ptr.vmem [resolvable:$true] %s65
      %71 = dma.hbm_to_vmem [thread:$0]  %s3, 512, %s66, [#allocation9], 128, 128, 8
    $region17: #{tpu_custom_call.1} parent=1 // pred_fallthru
      _
    // Predicated region
    $region18: #{tpu_custom_call.1} parent=1 // pred_check
      _
    $region19: #{tpu_custom_call.1} parent=1 // pred_check_branch
      %73 = sbr.rel (0) target = $region21
    $region20: #{tpu_custom_call.1} parent=1 // pred_region
      %s75 = ssub.s32 512, 512
      %76 = vsyncadd [#allocation9], %s75
      %s77 = sshll.u32 [#allocation10], 4
      %s78 = int_to_ptr.vmem [resolvable:$true] %s77
      %83 = dma.hbm_to_vmem [thread:$0]  %s4, 512, %s78, [#allocation9], 128, 128, 8
    $region21: #{tpu_custom_call.1} parent=1 // pred_fallthru
      _
    // Predicated region
    $region22: #{tpu_custom_call.1} parent=1 // pred_check
      _
    $region23: #{tpu_custom_call.1} parent=1 // pred_check_branch
      %85 = sbr.rel (0) target = $region25
    $region24: #{tpu_custom_call.1} parent=1 // pred_region
      _
    $region25: #{tpu_custom_call.1} parent=1 // pred_fallthru
      _
    // Predicated region
    $region26: #{tpu_custom_call.1} parent=1 // pred_check
      _
    $region27: #{tpu_custom_call.1} parent=1 // pred_check_branch
      %87 = sbr.rel (0) target = $region29
    $region28: #{tpu_custom_call.1} parent=1 // pred_region
      %s89 = ssub.s32 16, 16
      %90 = vsyncadd [#allocation12], %s89
      %s92 = sshll.u32 [#allocation11], 4
      %s93 = int_to_ptr.vmem [resolvable:$true] %s92
      %95 = dma.hbm_to_vmem [thread:$0]  %s6, 16, %s93, [#allocation12]
    $region29: #{tpu_custom_call.1} parent=1 // pred_fallthru
      _
    // Predicated region
    $region30: #{tpu_custom_call.1} parent=1 // pred_check
      _
    $region31: #{tpu_custom_call.1} parent=1 // pred_check_branch
      %97 = sbr.rel (0) target = $region33
    $region32: #{tpu_custom_call.1} parent=1 // pred_region
      %s99 = ssub.s32 16, 16
      %100 = vsyncadd [#allocation12], %s99
      %s102 = sshll.u32 [#allocation13], 4
      %s103 = int_to_ptr.vmem [resolvable:$true] %s102
      %105 = dma.hbm_to_vmem [thread:$0]  %s7, 16, %s103, [#allocation12]
    $region33: #{tpu_custom_call.1} parent=1 // pred_fallthru
      _
    // Predicated region
    $region34: #{tpu_custom_call.1} parent=1 // pred_check
      _
    $region35: #{tpu_custom_call.1} parent=1 // pred_check_branch
      %107 = sbr.rel (0) target = $region37
    $region36: #{tpu_custom_call.1} parent=1 // pred_region
      %s109 = ssub.s32 16, 16
      %110 = vsyncadd [#allocation15], %s109
      %s112 = sshll.u32 [#allocation14], 4
      %s113 = int_to_ptr.vmem [resolvable:$true] %s112
      %115 = dma.hbm_to_vmem [thread:$0]  %s8, 16, %s113, [#allocation15]
    $region37: #{tpu_custom_call.1} parent=1 // pred_fallthru
      _
    // Predicated region
    $region38: #{tpu_custom_call.1} parent=1 // pred_check
      _
    $region39: #{tpu_custom_call.1} parent=1 // pred_check_branch
      %117 = sbr.rel (0) target = $region41
    $region40: #{tpu_custom_call.1} parent=1 // pred_region
      _
    $region41: #{tpu_custom_call.1} parent=1 // pred_fallthru
      _
    // Predicated region
    $region42: #{tpu_custom_call.1} parent=1 // pred_check
      _
    $region43: #{tpu_custom_call.1} parent=1 // pred_check_branch
      %119 = sbr.rel (0) target = $region45
    $region44: #{tpu_custom_call.1} parent=1 // pred_region
      _
    $region45: #{tpu_custom_call.1} parent=1 // pred_fallthru
      _
    // Predicated region
    $region46: #{tpu_custom_call.1} parent=1 // pred_check
      _
    $region47: #{tpu_custom_call.1} parent=1 // pred_check_branch
      %121 = sbr.rel (0) target = $region49
    $region48: #{tpu_custom_call.1} parent=1 // pred_region
      %s123 = ssub.s32 512, 512
      %124 = vsyncadd [#allocation15], %s123
      %s125 = sshll.u32 [#allocation16], 4
      %s126 = int_to_ptr.vmem [resolvable:$true] %s125
      %131 = dma.hbm_to_vmem [thread:$0]  %s11, 512, %s126, [#allocation15], 128, 128, 8
    $region49: #{tpu_custom_call.1} parent=1 // pred_fallthru
      _
    // Predicated region
    $region50: #{tpu_custom_call.1} parent=1 // pred_check
      _
    $region51: #{tpu_custom_call.1} parent=1 // pred_check_branch
      %133 = sbr.rel (0) target = $region53
    $region52: #{tpu_custom_call.1} parent=1 // pred_region
      %s135 = ssub.s32 512, 512
      %136 = vsyncadd [#allocation18], %s135
      %s137 = sshll.u32 [#allocation17], 4
      %s138 = int_to_ptr.vmem [resolvable:$true] %s137
      %143 = dma.hbm_to_vmem [thread:$0]  %s12, 512, %s138, [#allocation18], 128, 128, 8
    $region53: #{tpu_custom_call.1} parent=1 // pred_fallthru
      _
    // Predicated region
    $region54: #{tpu_custom_call.1} parent=1 // pred_check
      _
    $region55: #{tpu_custom_call.1} parent=1 // pred_check_branch
      %145 = sbr.rel (0) target = $region57
    $region56: #{tpu_custom_call.1} parent=1 // pred_region
      %146 = dma.done [#allocation3], 32
    $region57: #{tpu_custom_call.1} parent=1 // pred_fallthru
      _
    // Predicated region
    $region58: #{tpu_custom_call.1} parent=1 // pred_check
      _
    $region59: #{tpu_custom_call.1} parent=1 // pred_check_branch
      %148 = sbr.rel (0) target = $region61
    $region60: #{tpu_custom_call.1} parent=1 // pred_region
      %149 = dma.done [#allocation6], 64
    $region61: #{tpu_custom_call.1} parent=1 // pred_fallthru
      _
    // Predicated region
    $region62: #{tpu_custom_call.1} parent=1 // pred_check
      _
    $region63: #{tpu_custom_call.1} parent=1 // pred_check_branch
      %151 = sbr.rel (0) target = $region65
    $region64: #{tpu_custom_call.1} parent=1 // pred_region
      %152 = dma.done [#allocation6], 512
    $region65: #{tpu_custom_call.1} parent=1 // pred_fallthru
      _
    // Predicated region
    $region66: #{tpu_custom_call.1} parent=1 // pred_check
      _
    $region67: #{tpu_custom_call.1} parent=1 // pred_check_branch
      %154 = sbr.rel (0) target = $region69
    $region68: #{tpu_custom_call.1} parent=1 // pred_region
      %155 = dma.done [#allocation9], 512
    $region69: #{tpu_custom_call.1} parent=1 // pred_fallthru
      _
    // Predicated region
    $region70: #{tpu_custom_call.1} parent=1 // pred_check
      _
    $region71: #{tpu_custom_call.1} parent=1 // pred_check_branch
      %157 = sbr.rel (0) target = $region73
    $region72: #{tpu_custom_call.1} parent=1 // pred_region
      %158 = dma.done [#allocation9], 512
    $region73: #{tpu_custom_call.1} parent=1 // pred_fallthru
      _
    // Predicated region
    $region74: #{tpu_custom_call.1} parent=1 // pred_check
      _
    $region75: #{tpu_custom_call.1} parent=1 // pred_check_branch
      %160 = sbr.rel (0) target = $region77
    $region76: #{tpu_custom_call.1} parent=1 // pred_region
      %161 = dma.done [#allocation12], 16
    $region77: #{tpu_custom_call.1} parent=1 // pred_fallthru
      _
    // Predicated region
    $region78: #{tpu_custom_call.1} parent=1 // pred_check
      _
    $region79: #{tpu_custom_call.1} parent=1 // pred_check_branch
      %163 = sbr.rel (0) target = $region81
    $region80: #{tpu_custom_call.1} parent=1 // pred_region
      %164 = dma.done [#allocation12], 16
    $region81: #{tpu_custom_call.1} parent=1 // pred_fallthru
      _
    // Predicated region
    $region82: #{tpu_custom_call.1} parent=1 // pred_check
      _
    $region83: #{tpu_custom_call.1} parent=1 // pred_check_branch
      %166 = sbr.rel (0) target = $region85
    $region84: #{tpu_custom_call.1} parent=1 // pred_region
      %167 = dma.done [#allocation15], 16
    $region85: #{tpu_custom_call.1} parent=1 // pred_fallthru
      _
    // Predicated region
    $region86: #{tpu_custom_call.1} parent=1 // pred_check
      _
    $region87: #{tpu_custom_call.1} parent=1 // pred_check_branch
      %169 = sbr.rel (0) target = $region89
    $region88: #{tpu_custom_call.1} parent=1 // pred_region
      %170 = dma.done [#allocation15], 512
    $region89: #{tpu_custom_call.1} parent=1 // pred_fallthru
      _
    // Predicated region
    $region90: #{tpu_custom_call.1} parent=1 // pred_check
      _
    $region91: #{tpu_custom_call.1} parent=1 // pred_check_branch
      %172 = sbr.rel (0) target = $region93
    $region92: #{tpu_custom_call.1} parent=1 // pred_region
      %173 = dma.done [#allocation18], 512
    $region93: #{tpu_custom_call.1} parent=1 // pred_fallthru
      _
    %v174 = vld [vmem:[#allocation2] sm:$0x3]
    %v175 = vld [vmem:[#allocation5] sm:$0xf]
    %v176 = vld [vmem:[%s5] sm:$0x1]
    %v178 = vlaneseq
    %v179 = vshrl.u32 %v178, 7
    %v180 = vsub.s32 0, %v179
    %v181 = vrot.slane %v176, %v180
    %vm183 = vcmask 31744
    %v185 = vsel %vm183, %v174, 0
    %vm187 = vcmask 1043456
    %v189 = vsel %vm187, %v175, 0
    %191 = vmatprep.subr.mxu0 0.0
    %192 = vmatpush1.msra.mxu0 %v189
    %193 = vmatprep.subr.mxu0 0.0
    %194 = vmatpush1.msra.mxu0 0.0
    %195 = vmatprep.subr.mxu0 0.0
    %196 = vmatpush1.msra.mxu0 0.0
    %197 = vmatprep.subr.mxu0 0.0
    %198 = vmatpush1.msra.mxu0 0.0
    %199 = vmatprep.subr.mxu0 0.0
    %200 = vmatpush1.msra.mxu0 0.0
    %201 = vmatprep.subr.mxu0 0.0
    %202 = vmatpush1.msra.mxu0 0.0
    %203 = vmatprep.subr.mxu0 0.0
    %204 = vmatpush1.msra.mxu0 0.0
    %205 = vmatprep.subr.mxu0 0.0
    %206 = vmatpush1.msra.mxu0 0.0
    %207 = vmatprep.subr.mxu0 0.0
    %208 = vmatpush1.msra.mxu0 0.0
    %209 = vmatprep.subr.mxu0 0.0
    %210 = vmatpush1.msra.mxu0 0.0
    %211 = vmatprep.subr.mxu0 0.0
    %212 = vmatpush1.msra.mxu0 0.0
    %213 = vmatprep.subr.mxu0 0.0
    %214 = vmatpush1.msra.mxu0 0.0
    %215 = vmatprep.subr.mxu0 0.0
    %216 = vmatpush1.msra.mxu0 0.0
    %217 = vmatprep.subr.mxu0 0.0
    %218 = vmatpush1.msra.mxu0 0.0
    %219 = vmatprep.subr.mxu0 0.0
    %220 = vmatpush1.msra.mxu0 0.0
    %221 = vmatprep.subr.mxu0 0.0
    %222 = vmatpush1.msra.mxu0 0.0
    %223 = vmatprep.subr.mxu0 0.0
    %224 = vmatpush1.msra.mxu0 0.0
    %225 = vmatprep.subr.mxu0 0.0
    %226 = vmatpush1.msra.mxu0 0.0
    %227 = vmatprep.subr.mxu0 0.0
    %228 = vmatpush1.msra.mxu0 0.0
    %229 = vmatprep.subr.mxu0 0.0
    %230 = vmatpush1.msra.mxu0 0.0
    %231 = vmatprep.subr.mxu0 0.0
    %232 = vmatpush1.msra.mxu0 0.0
    %233 = vmatprep.subr.mxu0 0.0
    %234 = vmatpush1.msra.mxu0 0.0
    %235 = vmatprep.subr.mxu0 0.0
    %236 = vmatpush1.msra.mxu0 0.0
    %237 = vmatprep.subr.mxu0 0.0
    %238 = vmatpush1.msra.mxu0 0.0
    %239 = vmatprep.subr.mxu0 0.0
    %240 = vmatpush1.msra.mxu0 0.0
    %241 = vmatprep.subr.mxu0 0.0
    %242 = vmatpush1.msra.mxu0 0.0
    %243 = vmatprep.subr.mxu0 0.0
    %244 = vmatpush1.msra.mxu0 0.0
    %245 = vmatprep.subr.mxu0 0.0
    %246 = vmatpush1.msra.mxu0 0.0
    %247 = vmatprep.subr.mxu0 0.0
    %248 = vmatpush1.msra.mxu0 0.0
    %249 = vmatprep.subr.mxu0 0.0
    %250 = vmatpush1.msra.mxu0 0.0
    %251 = vmatprep.subr.mxu0 0.0
    %252 = vmatpush1.msra.mxu0 0.0
    %253 = vmatprep.subr.mxu0 0.0
    %254 = vmatpush1.msra.mxu0 0.0
    %255 = vmatprep.mubr.f32.mxu0 0.0
    %256 = vmatmul.mubr.f32.gmra.mrb[0].mxu0 %v185
    %v257 = vpop.f32.mrb[0].mxu0
    %v258 = vadd.f32 %v181, %v257
    %v259 = vpop.f32.mrb[0].mxu0
    %260 = vdwg.mxu0
    %vm261 = vcmp.gt.f32.partialorder %v258, 0.0
    %v262 = vmul.f32 %v258, 0.01
    %v263 = vsel %vm261, %v258, %v262
    %v264 = vld [vmem:[#allocation7] sm:$0xff]
    %v265 = vld [vmem:[#allocation7 + $0x8] sm:$0xff]
    %v266 = vld [vmem:[#allocation7 + $0x10] sm:$0xff]
    %v267 = vld [vmem:[#allocation7 + $0x18] sm:$0xff]
    %v268 = vld [vmem:[#allocation11] sm:$0x1]
    %v270 = vlaneseq
    %v271 = vshrl.u32 %v270, 7
    %v272 = vsub.s32 0, %v271
    %v273 = vrot.slane %v268, %v272
    %vm275 = vcmask 261120
    %v277 = vsel %vm275, %v263, 0
    %279 = vmatprep.subr.mxu0 0.0
    %280 = vmatpush1.msra.mxu0 %v264
    %281 = vmatprep.subr.mxu0 0.0
    %282 = vmatpush1.msra.mxu0 %v265
    %283 = vmatprep.subr.mxu0 0.0
    %284 = vmatpush1.msra.mxu0 %v266
    %285 = vmatprep.subr.mxu0 0.0
    %286 = vmatpush1.msra.mxu0 %v267
    %287 = vmatprep.subr.mxu0 0.0
    %288 = vmatpush1.msra.mxu0 0.0
    %289 = vmatprep.subr.mxu0 0.0
    %290 = vmatpush1.msra.mxu0 0.0
    %291 = vmatprep.subr.mxu0 0.0
    %292 = vmatpush1.msra.mxu0 0.0
    %293 = vmatprep.subr.mxu0 0.0
    %294 = vmatpush1.msra.mxu0 0.0
    %295 = vmatprep.subr.mxu0 0.0
    %296 = vmatpush1.msra.mxu0 0.0
    %297 = vmatprep.subr.mxu0 0.0
    %298 = vmatpush1.msra.mxu0 0.0
    %299 = vmatprep.subr.mxu0 0.0
    %300 = vmatpush1.msra.mxu0 0.0
    %301 = vmatprep.subr.mxu0 0.0
    %302 = vmatpush1.msra.mxu0 0.0
    %303 = vmatprep.subr.mxu0 0.0
    %304 = vmatpush1.msra.mxu0 0.0
    %305 = vmatprep.subr.mxu0 0.0
    %306 = vmatpush1.msra.mxu0 0.0
    %307 = vmatprep.subr.mxu0 0.0
    %308 = vmatpush1.msra.mxu0 0.0
    %309 = vmatprep.subr.mxu0 0.0
    %310 = vmatpush1.msra.mxu0 0.0
    %311 = vmatprep.subr.mxu0 0.0
    %312 = vmatpush1.msra.mxu0 0.0
    %313 = vmatprep.subr.mxu0 0.0
    %314 = vmatpush1.msra.mxu0 0.0
    %315 = vmatprep.subr.mxu0 0.0
    %316 = vmatpush1.msra.mxu0 0.0
    %317 = vmatprep.subr.mxu0 0.0
    %318 = vmatpush1.msra.mxu0 0.0
    %319 = vmatprep.subr.mxu0 0.0
    %320 = vmatpush1.msra.mxu0 0.0
    %321 = vmatprep.subr.mxu0 0.0
    %322 = vmatpush1.msra.mxu0 0.0
    %323 = vmatprep.subr.mxu0 0.0
    %324 = vmatpush1.msra.mxu0 0.0
    %325 = vmatprep.subr.mxu0 0.0
    %326 = vmatpush1.msra.mxu0 0.0
    %327 = vmatprep.subr.mxu0 0.0
    %328 = vmatpush1.msra.mxu0 0.0
    %329 = vmatprep.subr.mxu0 0.0
    %330 = vmatpush1.msra.mxu0 0.0
    %331 = vmatprep.subr.mxu0 0.0
    %332 = vmatpush1.msra.mxu0 0.0
    %333 = vmatprep.subr.mxu0 0.0
    %334 = vmatpush1.msra.mxu0 0.0
    %335 = vmatprep.subr.mxu0 0.0
    %336 = vmatpush1.msra.mxu0 0.0
    %337 = vmatprep.subr.mxu0 0.0
    %338 = vmatpush1.msra.mxu0 0.0
    %339 = vmatprep.subr.mxu0 0.0
    %340 = vmatpush1.msra.mxu0 0.0
    %341 = vmatprep.subr.mxu0 0.0
    %342 = vmatpush1.msra.mxu0 0.0
    %343 = vmatprep.mubr.f32.mxu0 0.0
    %344 = vmatmul.mubr.f32.gmra.mrb[0].mxu0 %v277
    %v345 = vpop.f32.mrb[0].mxu0
    %v346 = vadd.f32 %v273, %v345
    %v347 = vpop.f32.mrb[0].mxu0
    %348 = vdwg.mxu0
    %vm349 = vcmp.gt.f32.partialorder %v346, 0.0
    %v350 = vmul.f32 %v346, 0.01
    %v351 = vsel %vm349, %v346, %v350
    %v352 = vld [vmem:[#allocation8] sm:$0xff]
    %v353 = vld [vmem:[#allocation8 + $0x8] sm:$0xff]
    %v354 = vld [vmem:[#allocation8 + $0x10] sm:$0xff]
    %v355 = vld [vmem:[#allocation8 + $0x18] sm:$0xff]
    %v356 = vld [vmem:[#allocation13] sm:$0x1]
    %v358 = vlaneseq
    %v359 = vshrl.u32 %v358, 7
    %v360 = vsub.s32 0, %v359
    %v361 = vrot.slane %v356, %v360
    %v364 = vsel %vm275, %v351, 0
    %366 = vmatprep.subr.mxu0 0.0
    %367 = vmatpush1.msra.mxu0 %v352
    %368 = vmatprep.subr.mxu0 0.0
    %369 = vmatpush1.msra.mxu0 %v353
    %370 = vmatprep.subr.mxu0 0.0
    %371 = vmatpush1.msra.mxu0 %v354
    %372 = vmatprep.subr.mxu0 0.0
    %373 = vmatpush1.msra.mxu0 %v355
    %374 = vmatprep.subr.mxu0 0.0
    %375 = vmatpush1.msra.mxu0 0.0
    %376 = vmatprep.subr.mxu0 0.0
    %377 = vmatpush1.msra.mxu0 0.0
    %378 = vmatprep.subr.mxu0 0.0
    %379 = vmatpush1.msra.mxu0 0.0
    %380 = vmatprep.subr.mxu0 0.0
    %381 = vmatpush1.msra.mxu0 0.0
    %382 = vmatprep.subr.mxu0 0.0
    %383 = vmatpush1.msra.mxu0 0.0
    %384 = vmatprep.subr.mxu0 0.0
    %385 = vmatpush1.msra.mxu0 0.0
    %386 = vmatprep.subr.mxu0 0.0
    %387 = vmatpush1.msra.mxu0 0.0
    %388 = vmatprep.subr.mxu0 0.0
    %389 = vmatpush1.msra.mxu0 0.0
    %390 = vmatprep.subr.mxu0 0.0
    %391 = vmatpush1.msra.mxu0 0.0
    %392 = vmatprep.subr.mxu0 0.0
    %393 = vmatpush1.msra.mxu0 0.0
    %394 = vmatprep.subr.mxu0 0.0
    %395 = vmatpush1.msra.mxu0 0.0
    %396 = vmatprep.subr.mxu0 0.0
    %397 = vmatpush1.msra.mxu0 0.0
    %398 = vmatprep.subr.mxu0 0.0
    %399 = vmatpush1.msra.mxu0 0.0
    %400 = vmatprep.subr.mxu0 0.0
    %401 = vmatpush1.msra.mxu0 0.0
    %402 = vmatprep.subr.mxu0 0.0
    %403 = vmatpush1.msra.mxu0 0.0
    %404 = vmatprep.subr.mxu0 0.0
    %405 = vmatpush1.msra.mxu0 0.0
    %406 = vmatprep.subr.mxu0 0.0
    %407 = vmatpush1.msra.mxu0 0.0
    %408 = vmatprep.subr.mxu0 0.0
    %409 = vmatpush1.msra.mxu0 0.0
    %410 = vmatprep.subr.mxu0 0.0
    %411 = vmatpush1.msra.mxu0 0.0
    %412 = vmatprep.subr.mxu0 0.0
    %413 = vmatpush1.msra.mxu0 0.0
    %414 = vmatprep.subr.mxu0 0.0
    %415 = vmatpush1.msra.mxu0 0.0
    %416 = vmatprep.subr.mxu0 0.0
    %417 = vmatpush1.msra.mxu0 0.0
    %418 = vmatprep.subr.mxu0 0.0
    %419 = vmatpush1.msra.mxu0 0.0
    %420 = vmatprep.subr.mxu0 0.0
    %421 = vmatpush1.msra.mxu0 0.0
    %422 = vmatprep.subr.mxu0 0.0
    %423 = vmatpush1.msra.mxu0 0.0
    %424 = vmatprep.subr.mxu0 0.0
    %425 = vmatpush1.msra.mxu0 0.0
    %426 = vmatprep.subr.mxu0 0.0
    %427 = vmatpush1.msra.mxu0 0.0
    %428 = vmatprep.subr.mxu0 0.0
    %429 = vmatpush1.msra.mxu0 0.0
    %430 = vmatprep.mubr.f32.mxu0 0.0
    %431 = vmatmul.mubr.f32.gmra.mrb[0].mxu0 %v364
    %v432 = vpop.f32.mrb[0].mxu0
    %v433 = vadd.f32 %v361, %v432
    %v434 = vpop.f32.mrb[0].mxu0
    %435 = vdwg.mxu0
    %vm436 = vcmp.gt.f32.partialorder %v433, 0.0
    %v437 = vmul.f32 %v433, 0.01
    %v438 = vsel %vm436, %v433, %v437
    %v439 = vld [vmem:[#allocation10] sm:$0xff]
    %v440 = vld [vmem:[#allocation10 + $0x8] sm:$0xff]
    %v441 = vld [vmem:[#allocation10 + $0x10] sm:$0xff]
    %v442 = vld [vmem:[#allocation10 + $0x18] sm:$0xff]
    %v443 = vld [vmem:[#allocation14] sm:$0x1]
    %v445 = vlaneseq
    %v446 = vshrl.u32 %v445, 7
    %v447 = vsub.s32 0, %v446
    %v448 = vrot.slane %v443, %v447
    %v451 = vsel %vm275, %v438, 0
    %453 = vmatprep.subr.mxu0 0.0
    %454 = vmatpush1.msra.mxu0 %v439
    %455 = vmatprep.subr.mxu0 0.0
    %456 = vmatpush1.msra.mxu0 %v440
    %457 = vmatprep.subr.mxu0 0.0
    %458 = vmatpush1.msra.mxu0 %v441
    %459 = vmatprep.subr.mxu0 0.0
    %460 = vmatpush1.msra.mxu0 %v442
    %461 = vmatprep.subr.mxu0 0.0
    %462 = vmatpush1.msra.mxu0 0.0
    %463 = vmatprep.subr.mxu0 0.0
    %464 = vmatpush1.msra.mxu0 0.0
    %465 = vmatprep.subr.mxu0 0.0
    %466 = vmatpush1.msra.mxu0 0.0
    %467 = vmatprep.subr.mxu0 0.0
    %468 = vmatpush1.msra.mxu0 0.0
    %469 = vmatprep.subr.mxu0 0.0
    %470 = vmatpush1.msra.mxu0 0.0
    %471 = vmatprep.subr.mxu0 0.0
    %472 = vmatpush1.msra.mxu0 0.0
    %473 = vmatprep.subr.mxu0 0.0
    %474 = vmatpush1.msra.mxu0 0.0
    %475 = vmatprep.subr.mxu0 0.0
    %476 = vmatpush1.msra.mxu0 0.0
    %477 = vmatprep.subr.mxu0 0.0
    %478 = vmatpush1.msra.mxu0 0.0
    %479 = vmatprep.subr.mxu0 0.0
    %480 = vmatpush1.msra.mxu0 0.0
    %481 = vmatprep.subr.mxu0 0.0
    %482 = vmatpush1.msra.mxu0 0.0
    %483 = vmatprep.subr.mxu0 0.0
    %484 = vmatpush1.msra.mxu0 0.0
    %485 = vmatprep.subr.mxu0 0.0
    %486 = vmatpush1.msra.mxu0 0.0
    %487 = vmatprep.subr.mxu0 0.0
    %488 = vmatpush1.msra.mxu0 0.0
    %489 = vmatprep.subr.mxu0 0.0
    %490 = vmatpush1.msra.mxu0 0.0
    %491 = vmatprep.subr.mxu0 0.0
    %492 = vmatpush1.msra.mxu0 0.0
    %493 = vmatprep.subr.mxu0 0.0
    %494 = vmatpush1.msra.mxu0 0.0
    %495 = vmatprep.subr.mxu0 0.0
    %496 = vmatpush1.msra.mxu0 0.0
    %497 = vmatprep.subr.mxu0 0.0
    %498 = vmatpush1.msra.mxu0 0.0
    %499 = vmatprep.subr.mxu0 0.0
    %500 = vmatpush1.msra.mxu0 0.0
    %501 = vmatprep.subr.mxu0 0.0
    %502 = vmatpush1.msra.mxu0 0.0
    %503 = vmatprep.subr.mxu0 0.0
    %504 = vmatpush1.msra.mxu0 0.0
    %505 = vmatprep.subr.mxu0 0.0
    %506 = vmatpush1.msra.mxu0 0.0
    %507 = vmatprep.subr.mxu0 0.0
    %508 = vmatpush1.msra.mxu0 0.0
    %509 = vmatprep.subr.mxu0 0.0
    %510 = vmatpush1.msra.mxu0 0.0
    %511 = vmatprep.subr.mxu0 0.0
    %512 = vmatpush1.msra.mxu0 0.0
    %513 = vmatprep.subr.mxu0 0.0
    %514 = vmatpush1.msra.mxu0 0.0
    %515 = vmatprep.subr.mxu0 0.0
    %516 = vmatpush1.msra.mxu0 0.0
    %517 = vmatprep.mubr.f32.mxu0 0.0
    %518 = vmatmul.mubr.f32.gmra.mrb[0].mxu0 %v451
    %v519 = vpop.f32.mrb[0].mxu0
    %v520 = vadd.f32 %v448, %v519
    %v521 = vpop.f32.mrb[0].mxu0
    %522 = vdwg.mxu0
    %v523 = vsub.f32 0.0, %v520
    %v524 = vmul.f32 %v523, 1.442695
    %v525 = vpow.pop %v524
    %v526 = vadd.f32 %v525, 1.0
    %v527 = vrcp.pop %v526
    %v528 = vmul.f32 1.0, %v527
    %vm529 = vcmask 254976
    %530 = vst.msk [vmem:[#allocation19] sm:$0x3] %vm529, %v528
    %v531 = vld [vmem:[%s9] sm:$0xf]
    %v533 = vsel %vm187, %v531, 0
    %535 = vmatprep.subr.mxu0 0.0
    %536 = vmatpush1.msra.mxu0 %v533
    %537 = vmatprep.subr.mxu0 0.0
    %538 = vmatpush1.msra.mxu0 0.0
    %539 = vmatprep.subr.mxu0 0.0
    %540 = vmatpush1.msra.mxu0 0.0
    %541 = vmatprep.subr.mxu0 0.0
    %542 = vmatpush1.msra.mxu0 0.0
    %543 = vmatprep.subr.mxu0 0.0
    %544 = vmatpush1.msra.mxu0 0.0
    %545 = vmatprep.subr.mxu0 0.0
    %546 = vmatpush1.msra.mxu0 0.0
    %547 = vmatprep.subr.mxu0 0.0
    %548 = vmatpush1.msra.mxu0 0.0
    %549 = vmatprep.subr.mxu0 0.0
    %550 = vmatpush1.msra.mxu0 0.0
    %551 = vmatprep.subr.mxu0 0.0
    %552 = vmatpush1.msra.mxu0 0.0
    %553 = vmatprep.subr.mxu0 0.0
    %554 = vmatpush1.msra.mxu0 0.0
    %555 = vmatprep.subr.mxu0 0.0
    %556 = vmatpush1.msra.mxu0 0.0
    %557 = vmatprep.subr.mxu0 0.0
    %558 = vmatpush1.msra.mxu0 0.0
    %559 = vmatprep.subr.mxu0 0.0
    %560 = vmatpush1.msra.mxu0 0.0
    %561 = vmatprep.subr.mxu0 0.0
    %562 = vmatpush1.msra.mxu0 0.0
    %563 = vmatprep.subr.mxu0 0.0
    %564 = vmatpush1.msra.mxu0 0.0
    %565 = vmatprep.subr.mxu0 0.0
    %566 = vmatpush1.msra.mxu0 0.0
    %567 = vmatprep.subr.mxu0 0.0
    %568 = vmatpush1.msra.mxu0 0.0
    %569 = vmatprep.subr.mxu0 0.0
    %570 = vmatpush1.msra.mxu0 0.0
    %571 = vmatprep.subr.mxu0 0.0
    %572 = vmatpush1.msra.mxu0 0.0
    %573 = vmatprep.subr.mxu0 0.0
    %574 = vmatpush1.msra.mxu0 0.0
    %575 = vmatprep.subr.mxu0 0.0
    %576 = vmatpush1.msra.mxu0 0.0
    %577 = vmatprep.subr.mxu0 0.0
    %578 = vmatpush1.msra.mxu0 0.0
    %579 = vmatprep.subr.mxu0 0.0
    %580 = vmatpush1.msra.mxu0 0.0
    %581 = vmatprep.subr.mxu0 0.0
    %582 = vmatpush1.msra.mxu0 0.0
    %583 = vmatprep.subr.mxu0 0.0
    %584 = vmatpush1.msra.mxu0 0.0
    %585 = vmatprep.subr.mxu0 0.0
    %586 = vmatpush1.msra.mxu0 0.0
    %587 = vmatprep.subr.mxu0 0.0
    %588 = vmatpush1.msra.mxu0 0.0
    %589 = vmatprep.subr.mxu0 0.0
    %590 = vmatpush1.msra.mxu0 0.0
    %591 = vmatprep.subr.mxu0 0.0
    %592 = vmatpush1.msra.mxu0 0.0
    %593 = vmatprep.subr.mxu0 0.0
    %594 = vmatpush1.msra.mxu0 0.0
    %595 = vmatprep.subr.mxu0 0.0
    %596 = vmatpush1.msra.mxu0 0.0
    %597 = vmatprep.subr.mxu0 0.0
    %598 = vmatpush1.msra.mxu0 0.0
    %599 = vmatprep.mubr.f32.mxu0 0.0
    %600 = vmatmul.mubr.f32.gmra.mrb[0].mxu0 %v185
    %v601 = vpop.f32.mrb[0].mxu0
    %v602 = vadd.f32 0.0, %v601
    %v603 = vpop.f32.mrb[0].mxu0
    %604 = vdwg.mxu0
    %vm605 = vcmp.gt.f32.partialorder %v602, 0.0
    %v606 = vmul.f32 %v602, 0.01
    %v607 = vsel %vm605, %v602, %v606
    %v608 = vld [vmem:[%s10] sm:$0xff]
    %v609 = vld [vmem:[%s10 + $0x8] sm:$0xff]
    %v610 = vld [vmem:[%s10 + $0x10] sm:$0xff]
    %v611 = vld [vmem:[%s10 + $0x18] sm:$0xff]
    %v613 = vsel %vm275, %v607, 0
    %615 = vmatprep.subr.mxu0 0.0
    %616 = vmatpush1.msra.mxu0 %v608
    %617 = vmatprep.subr.mxu0 0.0
    %618 = vmatpush1.msra.mxu0 %v609
    %619 = vmatprep.subr.mxu0 0.0
    %620 = vmatpush1.msra.mxu0 %v610
    %621 = vmatprep.subr.mxu0 0.0
    %622 = vmatpush1.msra.mxu0 %v611
    %623 = vmatprep.subr.mxu0 0.0
    %624 = vmatpush1.msra.mxu0 0.0
    %625 = vmatprep.subr.mxu0 0.0
    %626 = vmatpush1.msra.mxu0 0.0
    %627 = vmatprep.subr.mxu0 0.0
    %628 = vmatpush1.msra.mxu0 0.0
    %629 = vmatprep.subr.mxu0 0.0
    %630 = vmatpush1.msra.mxu0 0.0
    %631 = vmatprep.subr.mxu0 0.0
    %632 = vmatpush1.msra.mxu0 0.0
    %633 = vmatprep.subr.mxu0 0.0
    %634 = vmatpush1.msra.mxu0 0.0
    %635 = vmatprep.subr.mxu0 0.0
    %636 = vmatpush1.msra.mxu0 0.0
    %637 = vmatprep.subr.mxu0 0.0
    %638 = vmatpush1.msra.mxu0 0.0
    %639 = vmatprep.subr.mxu0 0.0
    %640 = vmatpush1.msra.mxu0 0.0
    %641 = vmatprep.subr.mxu0 0.0
    %642 = vmatpush1.msra.mxu0 0.0
    %643 = vmatprep.subr.mxu0 0.0
    %644 = vmatpush1.msra.mxu0 0.0
    %645 = vmatprep.subr.mxu0 0.0
    %646 = vmatpush1.msra.mxu0 0.0
    %647 = vmatprep.subr.mxu0 0.0
    %648 = vmatpush1.msra.mxu0 0.0
    %649 = vmatprep.subr.mxu0 0.0
    %650 = vmatpush1.msra.mxu0 0.0
    %651 = vmatprep.subr.mxu0 0.0
    %652 = vmatpush1.msra.mxu0 0.0
    %653 = vmatprep.subr.mxu0 0.0
    %654 = vmatpush1.msra.mxu0 0.0
    %655 = vmatprep.subr.mxu0 0.0
    %656 = vmatpush1.msra.mxu0 0.0
    %657 = vmatprep.subr.mxu0 0.0
    %658 = vmatpush1.msra.mxu0 0.0
    %659 = vmatprep.subr.mxu0 0.0
    %660 = vmatpush1.msra.mxu0 0.0
    %661 = vmatprep.subr.mxu0 0.0
    %662 = vmatpush1.msra.mxu0 0.0
    %663 = vmatprep.subr.mxu0 0.0
    %664 = vmatpush1.msra.mxu0 0.0
    %665 = vmatprep.subr.mxu0 0.0
    %666 = vmatpush1.msra.mxu0 0.0
    %667 = vmatprep.subr.mxu0 0.0
    %668 = vmatpush1.msra.mxu0 0.0
    %669 = vmatprep.subr.mxu0 0.0
    %670 = vmatpush1.msra.mxu0 0.0
    %671 = vmatprep.subr.mxu0 0.0
    %672 = vmatpush1.msra.mxu0 0.0
    %673 = vmatprep.subr.mxu0 0.0
    %674 = vmatpush1.msra.mxu0 0.0
    %675 = vmatprep.subr.mxu0 0.0
    %676 = vmatpush1.msra.mxu0 0.0
    %677 = vmatprep.subr.mxu0 0.0
    %678 = vmatpush1.msra.mxu0 0.0
    %679 = vmatprep.mubr.f32.mxu0 0.0
    %680 = vmatmul.mubr.f32.gmra.mrb[0].mxu0 %v613
    %v681 = vpop.f32.mrb[0].mxu0
    %v682 = vadd.f32 0.0, %v681
    %v683 = vpop.f32.mrb[0].mxu0
    %684 = vdwg.mxu0
    %vm685 = vcmp.gt.f32.partialorder %v682, 0.0
    %v686 = vmul.f32 %v682, 0.01
    %v687 = vsel %vm685, %v682, %v686
    %v688 = vld [vmem:[#allocation16] sm:$0xff]
    %v689 = vld [vmem:[#allocation16 + $0x8] sm:$0xff]
    %v690 = vld [vmem:[#allocation16 + $0x10] sm:$0xff]
    %v691 = vld [vmem:[#allocation16 + $0x18] sm:$0xff]
    %v693 = vsel %vm275, %v687, 0
    %695 = vmatprep.subr.mxu0 0.0
    %696 = vmatpush1.msra.mxu0 %v688
    %697 = vmatprep.subr.mxu0 0.0
    %698 = vmatpush1.msra.mxu0 %v689
    %699 = vmatprep.subr.mxu0 0.0
    %700 = vmatpush1.msra.mxu0 %v690
    %701 = vmatprep.subr.mxu0 0.0
    %702 = vmatpush1.msra.mxu0 %v691
    %703 = vmatprep.subr.mxu0 0.0
    %704 = vmatpush1.msra.mxu0 0.0
    %705 = vmatprep.subr.mxu0 0.0
    %706 = vmatpush1.msra.mxu0 0.0
    %707 = vmatprep.subr.mxu0 0.0
    %708 = vmatpush1.msra.mxu0 0.0
    %709 = vmatprep.subr.mxu0 0.0
    %710 = vmatpush1.msra.mxu0 0.0
    %711 = vmatprep.subr.mxu0 0.0
    %712 = vmatpush1.msra.mxu0 0.0
    %713 = vmatprep.subr.mxu0 0.0
    %714 = vmatpush1.msra.mxu0 0.0
    %715 = vmatprep.subr.mxu0 0.0
    %716 = vmatpush1.msra.mxu0 0.0
    %717 = vmatprep.subr.mxu0 0.0
    %718 = vmatpush1.msra.mxu0 0.0
    %719 = vmatprep.subr.mxu0 0.0
    %720 = vmatpush1.msra.mxu0 0.0
    %721 = vmatprep.subr.mxu0 0.0
    %722 = vmatpush1.msra.mxu0 0.0
    %723 = vmatprep.subr.mxu0 0.0
    %724 = vmatpush1.msra.mxu0 0.0
    %725 = vmatprep.subr.mxu0 0.0
    %726 = vmatpush1.msra.mxu0 0.0
    %727 = vmatprep.subr.mxu0 0.0
    %728 = vmatpush1.msra.mxu0 0.0
    %729 = vmatprep.subr.mxu0 0.0
    %730 = vmatpush1.msra.mxu0 0.0
    %731 = vmatprep.subr.mxu0 0.0
    %732 = vmatpush1.msra.mxu0 0.0
    %733 = vmatprep.subr.mxu0 0.0
    %734 = vmatpush1.msra.mxu0 0.0
    %735 = vmatprep.subr.mxu0 0.0
    %736 = vmatpush1.msra.mxu0 0.0
    %737 = vmatprep.subr.mxu0 0.0
    %738 = vmatpush1.msra.mxu0 0.0
    %739 = vmatprep.subr.mxu0 0.0
    %740 = vmatpush1.msra.mxu0 0.0
    %741 = vmatprep.subr.mxu0 0.0
    %742 = vmatpush1.msra.mxu0 0.0
    %743 = vmatprep.subr.mxu0 0.0
    %744 = vmatpush1.msra.mxu0 0.0
    %745 = vmatprep.subr.mxu0 0.0
    %746 = vmatpush1.msra.mxu0 0.0
    %747 = vmatprep.subr.mxu0 0.0
    %748 = vmatpush1.msra.mxu0 0.0
    %749 = vmatprep.subr.mxu0 0.0
    %750 = vmatpush1.msra.mxu0 0.0
    %751 = vmatprep.subr.mxu0 0.0
    %752 = vmatpush1.msra.mxu0 0.0
    %753 = vmatprep.subr.mxu0 0.0
    %754 = vmatpush1.msra.mxu0 0.0
    %755 = vmatprep.subr.mxu0 0.0
    %756 = vmatpush1.msra.mxu0 0.0
    %757 = vmatprep.subr.mxu0 0.0
    %758 = vmatpush1.msra.mxu0 0.0
    %759 = vmatprep.mubr.f32.mxu0 0.0
    %760 = vmatmul.mubr.f32.gmra.mrb[0].mxu0 %v693
    %v761 = vpop.f32.mrb[0].mxu0
    %v762 = vadd.f32 0.0, %v761
    %v763 = vpop.f32.mrb[0].mxu0
    %764 = vdwg.mxu0
    %vm765 = vcmp.gt.f32.partialorder %v762, 0.0
    %v766 = vmul.f32 %v762, 0.01
    %v767 = vsel %vm765, %v762, %v766
    %v768 = vld [vmem:[#allocation17] sm:$0xff]
    %v769 = vld [vmem:[#allocation17 + $0x8] sm:$0xff]
    %v770 = vld [vmem:[#allocation17 + $0x10] sm:$0xff]
    %v771 = vld [vmem:[#allocation17 + $0x18] sm:$0xff]
    %v773 = vsel %vm275, %v767, 0
    %775 = vmatprep.subr.mxu0 0.0
    %776 = vmatpush1.msra.mxu0 %v768
    %777 = vmatprep.subr.mxu0 0.0
    %778 = vmatpush1.msra.mxu0 %v769
    %779 = vmatprep.subr.mxu0 0.0
    %780 = vmatpush1.msra.mxu0 %v770
    %781 = vmatprep.subr.mxu0 0.0
    %782 = vmatpush1.msra.mxu0 %v771
    %783 = vmatprep.subr.mxu0 0.0
    %784 = vmatpush1.msra.mxu0 0.0
    %785 = vmatprep.subr.mxu0 0.0
    %786 = vmatpush1.msra.mxu0 0.0
    %787 = vmatprep.subr.mxu0 0.0
    %788 = vmatpush1.msra.mxu0 0.0
    %789 = vmatprep.subr.mxu0 0.0
    %790 = vmatpush1.msra.mxu0 0.0
    %791 = vmatprep.subr.mxu0 0.0
    %792 = vmatpush1.msra.mxu0 0.0
    %793 = vmatprep.subr.mxu0 0.0
    %794 = vmatpush1.msra.mxu0 0.0
    %795 = vmatprep.subr.mxu0 0.0
    %796 = vmatpush1.msra.mxu0 0.0
    %797 = vmatprep.subr.mxu0 0.0
    %798 = vmatpush1.msra.mxu0 0.0
    %799 = vmatprep.subr.mxu0 0.0
    %800 = vmatpush1.msra.mxu0 0.0
    %801 = vmatprep.subr.mxu0 0.0
    %802 = vmatpush1.msra.mxu0 0.0
    %803 = vmatprep.subr.mxu0 0.0
    %804 = vmatpush1.msra.mxu0 0.0
    %805 = vmatprep.subr.mxu0 0.0
    %806 = vmatpush1.msra.mxu0 0.0
    %807 = vmatprep.subr.mxu0 0.0
    %808 = vmatpush1.msra.mxu0 0.0
    %809 = vmatprep.subr.mxu0 0.0
    %810 = vmatpush1.msra.mxu0 0.0
    %811 = vmatprep.subr.mxu0 0.0
    %812 = vmatpush1.msra.mxu0 0.0
    %813 = vmatprep.subr.mxu0 0.0
    %814 = vmatpush1.msra.mxu0 0.0
    %815 = vmatprep.subr.mxu0 0.0
    %816 = vmatpush1.msra.mxu0 0.0
    %817 = vmatprep.subr.mxu0 0.0
    %818 = vmatpush1.msra.mxu0 0.0
    %819 = vmatprep.subr.mxu0 0.0
    %820 = vmatpush1.msra.mxu0 0.0
    %821 = vmatprep.subr.mxu0 0.0
    %822 = vmatpush1.msra.mxu0 0.0
    %823 = vmatprep.subr.mxu0 0.0
    %824 = vmatpush1.msra.mxu0 0.0
    %825 = vmatprep.subr.mxu0 0.0
    %826 = vmatpush1.msra.mxu0 0.0
    %827 = vmatprep.subr.mxu0 0.0
    %828 = vmatpush1.msra.mxu0 0.0
    %829 = vmatprep.subr.mxu0 0.0
    %830 = vmatpush1.msra.mxu0 0.0
    %831 = vmatprep.subr.mxu0 0.0
    %832 = vmatpush1.msra.mxu0 0.0
    %833 = vmatprep.subr.mxu0 0.0
    %834 = vmatpush1.msra.mxu0 0.0
    %835 = vmatprep.subr.mxu0 0.0
    %836 = vmatpush1.msra.mxu0 0.0
    %837 = vmatprep.subr.mxu0 0.0
    %838 = vmatpush1.msra.mxu0 0.0
    %839 = vmatprep.mubr.f32.mxu0 0.0
    %840 = vmatmul.mubr.f32.gmra.mrb[0].mxu0 %v773
    %v841 = vpop.f32.mrb[0].mxu0
    %v842 = vadd.f32 0.0, %v841
    %v843 = vpop.f32.mrb[0].mxu0
    %844 = vdwg.mxu0
    %845 = vst.msk [vmem:[#allocation20] sm:$0x3] %vm529, %v842
    // Predicated region
    $region94: #{tpu_custom_call.1} parent=1 // pred_check
      _
    $region95: #{tpu_custom_call.1} parent=1 // pred_check_branch
      %847 = sbr.rel (0) target = $region97
    $region96: #{tpu_custom_call.1} parent=1 // pred_region
      %s849 = ssub.s32 32, 32
      %850 = vsyncadd [#allocation4], %s849
      %s852 = sshll.u32 [#allocation19], 4
      %s853 = int_to_ptr.vmem [resolvable:$true] %s852
      %855 = dma.vmem_to_hbm [thread:$0]  %s853, 32, %s13, [#allocation4]
    $region97: #{tpu_custom_call.1} parent=1 // pred_fallthru
      _
    // Predicated region
    $region98: #{tpu_custom_call.1} parent=1 // pred_check
      _
    $region99: #{tpu_custom_call.1} parent=1 // pred_check_branch
      %857 = sbr.rel (0) target = $region101
    $region100: #{tpu_custom_call.1} parent=1 // pred_region
      %s859 = ssub.s32 32, 32
      %860 = vsyncadd [#allocation21], %s859
      %s862 = sshll.u32 [#allocation20], 4
      %s863 = int_to_ptr.vmem [resolvable:$true] %s862
      %865 = dma.vmem_to_hbm [thread:$0]  %s863, 32, %s14, [#allocation21]
    $region101: #{tpu_custom_call.1} parent=1 // pred_fallthru
      _
    // Predicated region
    $region102: #{tpu_custom_call.1} parent=1 // pred_check
      _
    $region103: #{tpu_custom_call.1} parent=1 // pred_check_branch
      %867 = sbr.rel (0) target = $region105
    $region104: #{tpu_custom_call.1} parent=1 // pred_region
      %868 = dma.done [#allocation4], 32
    $region105: #{tpu_custom_call.1} parent=1 // pred_fallthru
      _
    // Predicated region
    $region106: #{tpu_custom_call.1} parent=1 // pred_check
      _
    $region107: #{tpu_custom_call.1} parent=1 // pred_check_branch
      %870 = sbr.rel (0) target = $region109
    $region108: #{tpu_custom_call.1} parent=1 // pred_region
      %871 = dma.done [#allocation21], 32
    $region109: #{tpu_custom_call.1} parent=1 // pred_fallthru
      _
    %872 = vsyncpa [#allocation3], 1
    %873 = vsyncpa [#allocation6], 1
    %874 = vsyncpa [#allocation9], 1
    %875 = vsyncpa [#allocation12], 1
    %876 = vsyncpa [#allocation15], 1
    %877 = vsyncpa [#allocation18], 1
    %878 = vsyncpa [#allocation4], 1
    %879 = vsyncpa [#allocation21], 1

</llo_original>
